<compile_context>
chip_gen: v5e
topology: v5e:2x2
jax: 0.10.0
libtpu: 0.0.40
codegen_flags: <defaults>
</compile_context>

<pallas_src>
import functools

import jax
import jax.numpy as jnp
from jax.experimental import pallas as pl
from jax.experimental.pallas import tpu as pltpu

LANES = 128
SUBLANES = 8
MAX_TILE_ROWS = 2048   # 2048 x 128 x 4B = 1 MiB per input buffer -> VMEM-safe on v5e/v6e/v7x


# ----------------------------------------------------------------------------
# hdr scale
# ----------------------------------------------------------------------------
# TODO(synk): `hdr_scale` is not defined in the provided module source; using
# clamp(x, min=0) followed by the Reinhard tonemap x / (1 + x) as the stand-in.
def _hdr_kernel(x):
    x = jnp.maximum(x, 0.0)
    return x * pl.reciprocal(x + 1.0, approx=True)   # divide -> EUP reciprocal


def _hdr_ref(x):   # pure-JAX reference (exact divide), used only for the check in main
    x = jnp.maximum(x, 0.0)
    return x / (x + 1.0)


# ----------------------------------------------------------------------------
# Fused loss kernel:
#   sums (hdr(rgb) - hdr(gt))^2 and sums kd_grad, both over lane-dense tiles,
#   accumulating into full-tile VMEM scratch; one final reduce in the last step.
# ----------------------------------------------------------------------------
def _fused_loss_kernel(rgb_ref, gt_ref, kd_ref, out_ref, acc_img_ref, acc_kd_ref,
                       *, inv_n_img, inv_n_kd):
    step = pl.program_id(0)

    @pl.when(step == 0)
    def _():
        acc_img_ref[...] = jnp.zeros_like(acc_img_ref)
        acc_kd_ref[...] = jnp.zeros_like(acc_kd_ref)

    d = _hdr_kernel(rgb_ref[...]) - _hdr_kernel(gt_ref[...])
    acc_img_ref[...] += d * d            # full-tile VPU accumulate (no per-step XLU reduce)
    acc_kd_ref[...] += kd_ref[...]

    @pl.when(step == pl.num_programs(0) - 1)
    def _():
        img_mse = jnp.sum(acc_img_ref[...]) * inv_n_img     # single cross-lane reduce
        kd_mean = jnp.sum(acc_kd_ref[...]) * inv_n_kd
        row = jax.lax.broadcasted_iota(jnp.int32, (SUBLANES, LANES), 0)
        # lane-dense (8,128) output slab: row 0 = img_mse, row 1 = kd_mean
        out_ref[...] = jnp.where(row == 0, img_mse,
                                 jnp.where(row == 1, kd_mean, 0.0))


def _round_up(x, m):
    return ((x + m - 1) // m) * m


def _to_lane_rows(x, rows):
    """Flatten, zero-pad and reshape to a lane-dense (rows, 128) f32 array."""
    flat = x.reshape(-1).astype(jnp.float32)
    pad = rows * LANES - flat.shape[0]
    flat = jnp.pad(flat, (0, pad))       # zero padding contributes 0 to both sums
    return flat.reshape(rows, LANES)


def fused_loss_sums(rgb, rgb_gt, kd_grad):
    """One fused Pallas call returning (img_mse, kd_mean)."""
    n_img = int(rgb.size)
    n_kd = int(kd_grad.size)

    rows_img = pl.cdiv(n_img, LANES)
    rows_kd = pl.cdiv(n_kd, LANES)

    # Common grid; per-input tile heights (multiple of 8 sublanes). Small inputs -> grid=(1,).
    steps = max(1, pl.cdiv(max(rows_img, rows_kd), MAX_TILE_ROWS))
    tr = _round_up(pl.cdiv(rows_img, steps), SUBLANES)
    tk = _round_up(pl.cdiv(rows_kd, steps), SUBLANES)

    rgb_p = _to_lane_rows(rgb, steps * tr)
    gt_p = _to_lane_rows(rgb_gt, steps * tr)
    kd_p = _to_lane_rows(kd_grad, steps * tk)

    kernel = functools.partial(_fused_loss_kernel,
                               inv_n_img=1.0 / float(n_img),
                               inv_n_kd=1.0 / float(n_kd))

    out = pl.pallas_call(
        kernel,
        out_shape=jax.ShapeDtypeStruct((SUBLANES, LANES), jnp.float32),
        grid_spec=pltpu.PrefetchScalarGridSpec(
            num_scalar_prefetch=0,
            grid=(steps,),
            in_specs=[
                pl.BlockSpec((tr, LANES), lambda i: (i, 0)),
                pl.BlockSpec((tr, LANES), lambda i: (i, 0)),
                pl.BlockSpec((tk, LANES), lambda i: (i, 0)),
            ],
            out_specs=pl.BlockSpec((SUBLANES, LANES), lambda i: (0, 0)),
            scratch_shapes=[
                pltpu.VMEM((tr, LANES), jnp.float32),
                pltpu.VMEM((tk, LANES), jnp.float32),
            ],
        ),
        compiler_params=pltpu.CompilerParams(
            dimension_semantics=("arbitrary",),   # reduction axis
        ),
    )(rgb_p, gt_p, kd_p)

    return out[0, 0], out[1, 0]


# ----------------------------------------------------------------------------
# NvDiffRecLoss module (JAX / Pallas version)
# ----------------------------------------------------------------------------
class NvDiffRecLoss:
    def __init__(self):
        self.albedo_smooth_weight = 0.03

    def forward(self, model_outputs, rgb_gt, iteration):
        img_loss, kd_mean = fused_loss_sums(
            model_outputs['rgb'], rgb_gt, model_outputs['kd_grad'])
        reg_loss = kd_mean * (self.albedo_smooth_weight * min(1.0, iteration / 100))
        loss = img_loss + reg_loss
        return loss


if __name__ == "__main__":
    key = jax.random.PRNGKey(0)
    k1, k2, k3 = jax.random.split(key, 3)

    B, H, W = 2, 16, 16
    rgb = 0.5 * jnp.exp(jax.random.normal(k1, (B, H, W, 3), jnp.float32))      # HDR-ish
    rgb_gt = 0.5 * jnp.exp(jax.random.normal(k2, (B, H, W, 3), jnp.float32))
    kd_grad = jnp.abs(jax.random.normal(k3, (B, H, W, 1), jnp.float32))

    model_outputs = {'rgb': rgb, 'kd_grad': kd_grad}
    iteration = 50

    loss_mod = NvDiffRecLoss()
    loss = loss_mod.forward(model_outputs, rgb_gt, iteration)
    loss = jax.block_until_ready(loss)

    # pure-JAX reference (same hdr stand-in, exact divide; loose tol for approx recip)
    img_ref = jnp.mean((_hdr_ref(rgb) - _hdr_ref(rgb_gt)) ** 2)
    reg_ref = jnp.mean(kd_grad) * 0.03 * min(1.0, iteration / 100)
    ref = img_ref + reg_ref

    assert jnp.isfinite(loss), "loss is not finite"
    assert jnp.allclose(loss, ref, rtol=5e-2, atol=1e-3), (float(loss), float(ref))
    print("KERNEL_OK")
</pallas_src>

<mosaic_0001>
module attributes {stable_mosaic.version = 11 : i64} {
  func.func @_fused_loss_kernel(%arg0: i32, %arg1: memref<16x128xf32, #tpu.memory_space<vmem>>, %arg2: memref<16x128xf32, #tpu.memory_space<vmem>>, %arg3: memref<8x128xf32, #tpu.memory_space<vmem>>, %arg4: memref<8x128xf32, #tpu.memory_space<vmem>>, %arg5: memref<16x128xf32, #tpu.memory_space<vmem>>, %arg6: memref<8x128xf32, #tpu.memory_space<vmem>>) attributes {dimension_semantics = [#tpu.dimension_semantics<arbitrary>], iteration_bounds = array<i64: 1>, scalar_prefetch = 0 : i64, scratch_operands = 2 : i64, tpu.core_type = #tpu.core_type<tc>, window_params = [{transform_indices = @transform_0, window_bounds = array<i64: 16, 128>}, {transform_indices = @transform_1, window_bounds = array<i64: 16, 128>}, {transform_indices = @transform_2, window_bounds = array<i64: 8, 128>}, {pipeline_mode = #tpu.pipeline_mode<synchronous>, transform_indices = @transform_3, window_bounds = array<i64: 8, 128>}]} {
    %c0_i32 = arith.constant 0 : i32
    %0 = arith.cmpi eq, %arg0, %c0_i32 : i32
    %1 = arith.extui %0 : i1 to i32
    %c0_i32_0 = arith.constant 0 : i32
    %2 = arith.cmpi ne, %1, %c0_i32_0 : i32
    scf.if %2 {
      %cst_19 = arith.constant 0.000000e+00 : f32
      %29 = vector.broadcast %cst_19 : f32 to vector<16x128xf32>
      %c0_20 = arith.constant 0 : index
      %c0_21 = arith.constant 0 : index
      %30 = vector.load %arg5[%c0_20, %c0_21] : memref<16x128xf32, #tpu.memory_space<vmem>>, vector<16x128xf32>
      tpu.vector_store %arg5[%c0_20, %c0_21], %29 {strides = array<i32>} : memref<16x128xf32, #tpu.memory_space<vmem>>, vector<16x128xf32>,
      %cst_22 = arith.constant 0.000000e+00 : f32
      %31 = vector.broadcast %cst_22 : f32 to vector<8x128xf32>
      %c0_23 = arith.constant 0 : index
      %c0_24 = arith.constant 0 : index
      %32 = vector.load %arg6[%c0_23, %c0_24] : memref<8x128xf32, #tpu.memory_space<vmem>>, vector<8x128xf32>
      tpu.vector_store %arg6[%c0_23, %c0_24], %31 {strides = array<i32>} : memref<8x128xf32, #tpu.memory_space<vmem>>, vector<8x128xf32>,
    } else {
    }
    %c0 = arith.constant 0 : index
    %c0_1 = arith.constant 0 : index
    %3 = vector.load %arg1[%c0, %c0_1] : memref<16x128xf32, #tpu.memory_space<vmem>>, vector<16x128xf32>
    %cst = arith.constant 0.000000e+00 : f32
    %4 = vector.broadcast %cst : f32 to vector<16x128xf32>
    %5 = arith.maximumf %3, %4 : vector<16x128xf32>
    %cst_2 = arith.constant 1.000000e+00 : f32
    %6 = vector.broadcast %cst_2 : f32 to vector<16x128xf32>
    %7 = arith.addf %5, %6 : vector<16x128xf32>
    %8 = tpu.reciprocal %7 {approx = true} : vector<16x128xf32> -> vector<16x128xf32>
    %9 = arith.mulf %5, %8 : vector<16x128xf32>
    %c0_3 = arith.constant 0 : index
    %c0_4 = arith.constant 0 : index
    %10 = vector.load %arg2[%c0_3, %c0_4] : memref<16x128xf32, #tpu.memory_space<vmem>>, vector<16x128xf32>
    %cst_5 = arith.constant 0.000000e+00 : f32
    %11 = vector.broadcast %cst_5 : f32 to vector<16x128xf32>
    %12 = arith.maximumf %10, %11 : vector<16x128xf32>
    %cst_6 = arith.constant 1.000000e+00 : f32
    %13 = vector.broadcast %cst_6 : f32 to vector<16x128xf32>
    %14 = arith.addf %12, %13 : vector<16x128xf32>
    %15 = tpu.reciprocal %14 {approx = true} : vector<16x128xf32> -> vector<16x128xf32>
    %16 = arith.mulf %12, %15 : vector<16x128xf32>
    %17 = arith.subf %9, %16 : vector<16x128xf32>
    %c0_7 = arith.constant 0 : index
    %c0_8 = arith.constant 0 : index
    %18 = vector.load %arg5[%c0_7, %c0_8] : memref<16x128xf32, #tpu.memory_space<vmem>>, vector<16x128xf32>
    %19 = arith.mulf %17, %17 : vector<16x128xf32>
    %20 = arith.addf %18, %19 : vector<16x128xf32>
    %c0_9 = arith.constant 0 : index
    %c0_10 = arith.constant 0 : index
    %21 = vector.load %arg5[%c0_9, %c0_10] : memref<16x128xf32, #tpu.memory_space<vmem>>, vector<16x128xf32>
    tpu.vector_store %arg5[%c0_9, %c0_10], %20 {strides = array<i32>} : memref<16x128xf32, #tpu.memory_space<vmem>>, vector<16x128xf32>,
    %c0_11 = arith.constant 0 : index
    %c0_12 = arith.constant 0 : index
    %22 = vector.load %arg6[%c0_11, %c0_12] : memref<8x128xf32, #tpu.memory_space<vmem>>, vector<8x128xf32>
    %c0_13 = arith.constant 0 : index
    %c0_14 = arith.constant 0 : index
    %23 = vector.load %arg3[%c0_13, %c0_14] : memref<8x128xf32, #tpu.memory_space<vmem>>, vector<8x128xf32>
    %24 = arith.addf %22, %23 : vector<8x128xf32>
    %c0_15 = arith.constant 0 : index
    %c0_16 = arith.constant 0 : index
    %25 = vector.load %arg6[%c0_15, %c0_16] : memref<8x128xf32, #tpu.memory_space<vmem>>, vector<8x128xf32>
    tpu.vector_store %arg6[%c0_15, %c0_16], %24 {strides = array<i32>} : memref<8x128xf32, #tpu.memory_space<vmem>>, vector<8x128xf32>,
    %c0_i32_17 = arith.constant 0 : i32
    %26 = arith.cmpi eq, %arg0, %c0_i32_17 : i32
    %27 = arith.extui %26 : i1 to i32
    %c0_i32_18 = arith.constant 0 : i32
    %28 = arith.cmpi ne, %27, %c0_i32_18 : i32
    scf.if %28 {
      %c0_19 = arith.constant 0 : index
      %c0_20 = arith.constant 0 : index
      %29 = vector.load %arg5[%c0_19, %c0_20] : memref<16x128xf32, #tpu.memory_space<vmem>>, vector<16x128xf32>
      %30 = vector.shape_cast %29 : vector<16x128xf32> to vector<1x16x128xf32>
      %cst_21 = arith.constant dense<0.000000e+00> : vector<1xf32>
      %31 = vector.multi_reduction <add>, %30, %cst_21 [1, 2] : vector<1x16x128xf32> to vector<1xf32>
      %32 = vector.shape_cast %31 : vector<1xf32> to vector<1x1x1xf32>
      %33 = vector.extract %32[0, 0, 0] : f32 from vector<1x1x1xf32>
      %cst_22 = arith.constant 6.51041686E-4 : f32
      %34 = arith.mulf %33, %cst_22 : f32
      %c0_23 = arith.constant 0 : index
      %c0_24 = arith.constant 0 : index
      %35 = vector.load %arg6[%c0_23, %c0_24] : memref<8x128xf32, #tpu.memory_space<vmem>>, vector<8x128xf32>
      %36 = vector.shape_cast %35 : vector<8x128xf32> to vector<1x8x128xf32>
      %cst_25 = arith.constant dense<0.000000e+00> : vector<1xf32>
      %37 = vector.multi_reduction <add>, %36, %cst_25 [1, 2] : vector<1x8x128xf32> to vector<1xf32>
      %38 = vector.shape_cast %37 : vector<1xf32> to vector<1x1x1xf32>
      %39 = vector.extract %38[0, 0, 0] : f32 from vector<1x1x1xf32>
      %cst_26 = arith.constant 0.001953125 : f32
      %40 = arith.mulf %39, %cst_26 : f32
      %41 = tpu.iota {dimensions = array<i32: 0>} : vector<8x128xi32>
      %c0_i32_27 = arith.constant 0 : i32
      %42 = vector.broadcast %c0_i32_27 : i32 to vector<8x128xi32>
      %43 = arith.cmpi eq, %41, %42 : vector<8x128xi32>
      %c1_i32 = arith.constant 1 : i32
      %44 = vector.broadcast %c1_i32 : i32 to vector<8x128xi32>
      %45 = arith.cmpi eq, %41, %44 : vector<8x128xi32>
      %cst_28 = arith.constant 0.000000e+00 : f32
      %46 = vector.broadcast %40 : f32 to vector<8x128xf32>
      %47 = vector.broadcast %cst_28 : f32 to vector<8x128xf32>
      %48 = arith.select %45, %46, %47 : vector<8x128xi1>, vector<8x128xf32>
      %49 = vector.broadcast %34 : f32 to vector<8x128xf32>
      %50 = arith.select %43, %49, %48 : vector<8x128xi1>, vector<8x128xf32>
      %c0_29 = arith.constant 0 : index
      %c0_30 = arith.constant 0 : index
      %51 = vector.load %arg4[%c0_29, %c0_30] : memref<8x128xf32, #tpu.memory_space<vmem>>, vector<8x128xf32>
      tpu.vector_store %arg4[%c0_29, %c0_30], %50 {strides = array<i32>} : memref<8x128xf32, #tpu.memory_space<vmem>>, vector<8x128xf32>,
    } else {
    }
    return
  }
  func.func @transform_0(%arg0: i32) -> (i32, i32) {
    %c0_i32 = arith.constant 0 : i32
    %c0_i32_0 = arith.constant 0 : i32
    return %arg0, %c0_i32 : i32, i32
  }
  func.func @transform_1(%arg0: i32) -> (i32, i32) {
    %c0_i32 = arith.constant 0 : i32
    %c0_i32_0 = arith.constant 0 : i32
    return %arg0, %c0_i32 : i32, i32
  }
  func.func @transform_2(%arg0: i32) -> (i32, i32) {
    %c0_i32 = arith.constant 0 : i32
    %c0_i32_0 = arith.constant 0 : i32
    return %arg0, %c0_i32 : i32, i32
  }
  func.func @transform_3(%arg0: i32) -> (i32, i32) {
    %c0_i32 = arith.constant 0 : i32
    %c0_i32_0 = arith.constant 0 : i32
    %c0_i32_1 = arith.constant 0 : i32
    return %c0_i32, %c0_i32_0 : i32, i32
  }
}

</mosaic_0001>

<llo_original>
// kernel: tpu_custom_call.1
$region0: #{tpu_custom_call.1}
  #allocation0 [shape = 'u32[]', space=smem, size = 0x4, offset = 0x4, fixed_abs, tag = 'smem constant byte address 0x4 - core index']
  #allocation1 [shape = 'u32[72,128]{1,0:T(1,128)}', space=vmem, size = 0x9000, scoped, tag = 'internal scratch']
  #allocation2 [shape = 'f32[16,128]{1,0:T(8,128)}', space=vmem, size = 0x2000, scoped, tag = 'scratch operand']
  #allocation3 [shape = 'f32[8,128]{1,0:T(8,128)}', space=vmem, size = 0x1000, scoped, tag = 'scratch operand']
  %s0 = inlined_call_operand.hbm [shape: f32[16,128], index: 0, kind: input, shape index: {}]
  %s1 = inlined_call_operand.hbm [shape: f32[16,128], index: 1, kind: input, shape index: {}]
  %s2 = inlined_call_operand.hbm [shape: f32[8,128], index: 2, kind: input, shape index: {}]
  %s3 = inlined_call_operand.hbm [shape: f32[8,128], index: 3, kind: output, shape index: {}]
  %s4 = sld [smem:[#allocation0]]
  $region42: #{tpu_custom_call.1} parent=0
    _
  %s6 = ssub.s32 1, %s4
  %s7 = scalar_select 0, %s6, %s4
  $region1: #{tpu_custom_call.1} parent=0
    #allocation4 [shape = 'u8[8192]{0}', space=vmem, size = 0x2000, scoped, tag = 'input window, operand 0, single buffered']
    #allocation5 [shape = 's32[1]{0}', space=sflag, size = 0x4, scoped, tag = 'scoped memory for tpu_custom_call.1']
    #allocation6 [shape = 's32[1]{0}', space=sflag, size = 0x4, scoped, tag = 'scoped memory for tpu_custom_call.1']
    #allocation7 [shape = 'u8[8192]{0}', space=vmem, size = 0x2000, scoped, tag = 'input window, operand 1, single buffered']
    #allocation8 [shape = 's32[1]{0}', space=sflag, size = 0x4, scoped, tag = 'scoped memory for tpu_custom_call.1']
    #allocation9 [shape = 'u8[4096]{0}', space=vmem, size = 0x1000, scoped, tag = 'input window, operand 2, single buffered']
    #allocation10 [shape = 'u8[4096]{0}', space=vmem, size = 0x1000, scoped, tag = 'output window, operand 0, single buffered']
    %8 = vsyncpa [#allocation5], 0
    %9 = vsyncpa [#allocation8], 0
    %10 = vsyncpa [#allocation6], 0
    // Predicated region
    $region2: #{tpu_custom_call.1} parent=1 // pred_check
      _
    $region3: #{tpu_custom_call.1} parent=1 // pred_check_branch
      %12 = sbr.rel (0) target = $region5
    $region4: #{tpu_custom_call.1} parent=1 // pred_region
      %14 = vsyncadd [#allocation5], 0
      %s15 = sshll.u32 %s0, 4
      %s16 = int_to_ptr.hbm [resolvable:$true] %s15
      %s17 = sshll.u32 [#allocation4], 4
      %s18 = int_to_ptr.vmem [resolvable:$true] %s17
      %23 = dma.hbm_to_vmem [thread:$0]  %s16, 256, %s18, [#allocation5], 128, 128, 8
    $region5: #{tpu_custom_call.1} parent=1 // pred_fallthru
      _
    // Predicated region
    $region6: #{tpu_custom_call.1} parent=1 // pred_check
      _
    $region7: #{tpu_custom_call.1} parent=1 // pred_check_branch
      %25 = sbr.rel (0) target = $region9
    $region8: #{tpu_custom_call.1} parent=1 // pred_region
      %27 = vsyncadd [#allocation8], 0
      %s28 = sshll.u32 %s1, 4
      %s29 = int_to_ptr.hbm [resolvable:$true] %s28
      %s30 = sshll.u32 [#allocation7], 4
      %s31 = int_to_ptr.vmem [resolvable:$true] %s30
      %36 = dma.hbm_to_vmem [thread:$0]  %s29, 256, %s31, [#allocation8], 128, 128, 8
    $region9: #{tpu_custom_call.1} parent=1 // pred_fallthru
      _
    // Predicated region
    $region10: #{tpu_custom_call.1} parent=1 // pred_check
      _
    $region11: #{tpu_custom_call.1} parent=1 // pred_check_branch
      %38 = sbr.rel (0) target = $region13
    $region12: #{tpu_custom_call.1} parent=1 // pred_region
      %40 = vsyncadd [#allocation8], 0
      %s42 = sshll.u32 %s2, 4
      %s43 = int_to_ptr.hbm [resolvable:$true] %s42
      %s44 = sshll.u32 [#allocation9], 4
      %s45 = int_to_ptr.vmem [resolvable:$true] %s44
      %47 = dma.hbm_to_vmem [thread:$0]  %s43, 128, %s45, [#allocation8]
    $region13: #{tpu_custom_call.1} parent=1 // pred_fallthru
      _
    // Predicated region
    $region14: #{tpu_custom_call.1} parent=1 // pred_check
      _
    $region15: #{tpu_custom_call.1} parent=1 // pred_check_branch
      %49 = sbr.rel (0) target = $region17
    $region16: #{tpu_custom_call.1} parent=1 // pred_region
      %51 = dma.done [#allocation5], 256
    $region17: #{tpu_custom_call.1} parent=1 // pred_fallthru
      _
    // Predicated region
    $region18: #{tpu_custom_call.1} parent=1 // pred_check
      _
    $region19: #{tpu_custom_call.1} parent=1 // pred_check_branch
      %53 = sbr.rel (0) target = $region21
    $region20: #{tpu_custom_call.1} parent=1 // pred_region
      %55 = dma.done [#allocation8], 256
    $region21: #{tpu_custom_call.1} parent=1 // pred_fallthru
      _
    // Predicated region
    $region22: #{tpu_custom_call.1} parent=1 // pred_check
      _
    $region23: #{tpu_custom_call.1} parent=1 // pred_check_branch
      %57 = sbr.rel (0) target = $region25
    $region24: #{tpu_custom_call.1} parent=1 // pred_region
      %59 = dma.done [#allocation8], 128
    $region25: #{tpu_custom_call.1} parent=1 // pred_fallthru
      _
    %p60 = scmp.eq.s32.totalorder 0, 0
    // Predicated region
    $region26: #{tpu_custom_call.1} parent=1 // pred_check
      %p61 = pneg %p60
    $region27: #{tpu_custom_call.1} parent=1 // pred_check_branch
      %63 = sbr.rel (%p61) target = $region29
    $region28: #{tpu_custom_call.1} parent=1 // pred_region
      %64 = vst [vmem:[#allocation2] sm:$0xff] 0.0
      %65 = vst [vmem:[#allocation2 + $0x8] sm:$0xff] 0.0
      %66 = vst [vmem:[#allocation3] sm:$0xff] 0.0
    $region29: #{tpu_custom_call.1} parent=1 // pred_fallthru
      _
    %v67 = vld [vmem:[#allocation4] sm:$0xff]
    %v68 = vld [vmem:[#allocation4 + $0x8] sm:$0xff]
    %v69 = vmax.f32 %v67, 0.0
    %v70 = vmax.f32 %v68, 0.0
    %v71 = vadd.f32 %v69, 1.0
    %v72 = vadd.f32 %v70, 1.0
    %v73 = vrcp.pop %v71
    %v74 = vrcp.pop %v72
    %v75 = vmul.f32 %v69, %v73
    %v76 = vmul.f32 %v70, %v74
    %v77 = vld [vmem:[#allocation7] sm:$0xff]
    %v78 = vld [vmem:[#allocation7 + $0x8] sm:$0xff]
    %v79 = vmax.f32 %v77, 0.0
    %v80 = vmax.f32 %v78, 0.0
    %v81 = vadd.f32 %v79, 1.0
    %v82 = vadd.f32 %v80, 1.0
    %v83 = vrcp.pop %v81
    %v84 = vrcp.pop %v82
    %v85 = vmul.f32 %v79, %v83
    %v86 = vmul.f32 %v80, %v84
    %v87 = vsub.f32 %v75, %v85
    %v88 = vsub.f32 %v76, %v86
    %v89 = vld [vmem:[#allocation2] sm:$0xff]
    %v90 = vld [vmem:[#allocation2 + $0x8] sm:$0xff]
    %v91 = vmul.f32 %v87, %v87
    %v92 = vmul.f32 %v88, %v88
    %v93 = vadd.f32 %v89, %v91
    %v94 = vadd.f32 %v90, %v92
    %95 = vst [vmem:[#allocation2] sm:$0xff] %v93
    %96 = vst [vmem:[#allocation2 + $0x8] sm:$0xff] %v94
    %v97 = vld [vmem:[#allocation3] sm:$0xff]
    %v98 = vld [vmem:[#allocation9] sm:$0xff]
    %v99 = vadd.f32 %v97, %v98
    %100 = vst [vmem:[#allocation3] sm:$0xff] %v99
    // Predicated region
    $region30: #{tpu_custom_call.1} parent=1 // pred_check
      %p101 = pneg %p60
    $region31: #{tpu_custom_call.1} parent=1 // pred_check_branch
      %103 = sbr.rel (%p101) target = $region33
    $region32: #{tpu_custom_call.1} parent=1 // pred_region
      %v104 = vld [vmem:[#allocation2] sm:$0xff]
      %v105 = vld [vmem:[#allocation2 + $0x8] sm:$0xff]
      %v106 = vadd.f32 %v104, %v105
      %107 = vadd.xlane.f32.xlu0 %v106
      %v108 = vpop.xlane.xlu0 %107
      %v109 = vrot.slane %v108, 4
      %v110 = vadd.f32 %v108, %v109
      %v111 = vrot.slane %v110, 2
      %v112 = vadd.f32 %v110, %v111
      %v113 = vrot.slane %v112, 1
      %v114 = vadd.f32 %v112, %v113
      %s115 = vtos %v114
      %s116 = smul.f32 %s115, 0.0006510417
      %v117 = vld [vmem:[#allocation3] sm:$0xff]
      %118 = vadd.xlane.f32.xlu0 %v117
      %v119 = vpop.xlane.xlu0 %118
      %v120 = vrot.slane %v119, 4
      %v121 = vadd.f32 %v119, %v120
      %v122 = vrot.slane %v121, 2
      %v123 = vadd.f32 %v121, %v122
      %v124 = vrot.slane %v123, 1
      %v125 = vadd.f32 %v123, %v124
      %s126 = vtos %v125
      %s127 = smul.f32 %s126, 0.001953125
      %v128 = vlaneseq
      %v129 = vshrl.u32 %v128, 7
      %vm130 = vcmp.eq.s32.totalorder %v129, 0
      %vm131 = vcmp.eq.s32.totalorder %v129, 1
      %v132 = vstv %s127
      %v133 = vsel %vm131, %v132, 0.0
      %v134 = vstv %s116
      %v135 = vsel %vm130, %v134, %v133
      %136 = vst [vmem:[#allocation10] sm:$0xff] %v135
    $region33: #{tpu_custom_call.1} parent=1 // pred_fallthru
      _
    // Predicated region
    $region34: #{tpu_custom_call.1} parent=1 // pred_check
      _
    $region35: #{tpu_custom_call.1} parent=1 // pred_check_branch
      %138 = sbr.rel (0) target = $region37
    $region36: #{tpu_custom_call.1} parent=1 // pred_region
      %140 = vsyncadd [#allocation6], 0
      %s142 = sshll.u32 [#allocation10], 4
      %s143 = int_to_ptr.vmem [resolvable:$true] %s142
      %s144 = sshll.u32 %s3, 4
      %s145 = int_to_ptr.hbm [resolvable:$true] %s144
      %147 = dma.vmem_to_hbm [thread:$0]  %s143, 128, %s145, [#allocation6]
    $region37: #{tpu_custom_call.1} parent=1 // pred_fallthru
      _
    // Predicated region
    $region38: #{tpu_custom_call.1} parent=1 // pred_check
      _
    $region39: #{tpu_custom_call.1} parent=1 // pred_check_branch
      %149 = sbr.rel (0) target = $region41
    $region40: #{tpu_custom_call.1} parent=1 // pred_region
      %151 = dma.done [#allocation6], 128
    $region41: #{tpu_custom_call.1} parent=1 // pred_fallthru
      _
    %152 = vsyncpa [#allocation5], 1
    %153 = vsyncpa [#allocation8], 1
    %154 = vsyncpa [#allocation6], 1

</llo_original>
